<compile_context>
chip_gen: v5e
topology: v5e:2x2
jax: 0.10.0
libtpu: 0.0.40
codegen_flags: <defaults>
</compile_context>

<pallas_src>
import functools

import jax
import jax.numpy as jnp
from jax.experimental import pallas as pl
from jax.experimental.pallas import tpu as pltpu

# SELU constants (match torch.nn.SELU)
_SELU_ALPHA = 1.6732632423543772848170429916717
_SELU_SCALE = 1.0507009873554804934193349852946


def _selu(x):
    # Python-float constants are weak-typed, so this preserves x's dtype
    # (f32 on v5e, bf16 on v6e/v7x inside the kernel).
    return _SELU_SCALE * jnp.where(x > 0, x, _SELU_ALPHA * (jnp.exp(x) - 1.0))


def _round_up(n, m):
    return ((n + m - 1) // m) * m


def _cdiv(a, b):
    return -(-a // b)


def _default_act_dtype():
    """bf16 activations on v6e/v7x (bf16 VPU/EUP); f32 elsewhere (v5e has neither)."""
    try:
        kind = jax.devices()[0].device_kind.lower()
    except Exception:
        return jnp.float32
    if "v6" in kind or "v7" in kind:
        return jnp.bfloat16
    return jnp.float32


def _choose_tile_b(B, tile_b):
    """Batch tile: multiple of 16, <= tile_b, and (cheaply) an even grid-step count.

    Even step counts keep v7x's two TensorCores balanced on the "parallel"
    axis; a 2-vs-1 split would idle one core for a third of the kernel.
    v5e/v6e have a single TC, so this only costs them a tiny bit of per-step
    overhead.
    """
    if B <= 16:
        return 16
    # Largest tile (capped at tile_b) that still gives >= 2 grid steps.
    tb = min(int(tile_b), _round_up(_cdiv(B, 2), 16))
    tb = max(16, _round_up(tb, 16))
    steps = _cdiv(B, tb)
    if steps % 2 == 1:
        tb_even = _round_up(_cdiv(B, steps + 1), 16)
        if _cdiv(B, tb_even) % 2 == 0:
            tb = tb_even
    return tb


def _fedpdnn_kernel(x_ref,
                    w1_ref, b1_ref, w2_ref, b2_ref, w3_ref, b3_ref,
                    w4_ref, b4_ref, w5_ref, b5_ref, w6_ref, b6_ref,
                    o_ref, *, act_dtype):
    """Fused MLP: 6 matmuls + SELU activations + final sigmoid, one batch tile."""
    # x arrives in native f32; pack to bf16 in-kernel (hidden under MXU/EUP work).
    h = x_ref[...].astype(jnp.bfloat16)

    def linear(h_bf16, w_ref, b_ref):
        # bf16 x bf16 operands, f32 accumulation on the MXU; bias add in f32.
        return jnp.dot(h_bf16, w_ref[...], preferred_element_type=jnp.float32) + b_ref[...]

    def act(h_f32):
        # SELU in act_dtype (bf16 on v6e/v7x, f32 on v5e); next matmul wants bf16.
        return _selu(h_f32.astype(act_dtype)).astype(jnp.bfloat16)

    h = act(linear(h, w1_ref, b1_ref))   # (tb, 128)
    h = act(linear(h, w2_ref, b2_ref))   # (tb, 64)
    h = act(linear(h, w3_ref, b3_ref))   # (tb, 64)
    h = act(linear(h, w4_ref, b4_ref))   # (tb, 32)
    h = act(linear(h, w5_ref, b5_ref))   # (tb, 32)
    h = linear(h, w6_ref, b6_ref)        # (tb, out_features), f32

    # sigmoid(h) = 1 / (1 + exp(-h)); keep the divide on the EUP slot.
    sig = pl.reciprocal(1.0 + jnp.exp(-h), approx=True)
    o_ref[...] = sig.astype(o_ref.dtype)


def fedpdnn_forward(x, params, *, tile_b=2048, act_dtype=None):
    """x: (B, in_features) f32. params: list of (W, b) with W:(in,out), b:(1,out)."""
    B, in_features = x.shape
    out_features = int(params[-1][0].shape[1])

    if act_dtype is None:
        act_dtype = _default_act_dtype()

    tb = _choose_tile_b(B, tile_b)
    grid = (pl.cdiv(B, tb),)   # ragged edge block: Pallas clips its writes

    # Weights bf16 (MXU operands), biases f32 (added to the f32 accumulator).
    flat_params = []
    for (w, b) in params:
        flat_params.append(w.astype(jnp.bfloat16))
        flat_params.append(b.astype(jnp.float32).reshape(1, -1))

    # Weights/biases: full-array blocks with a constant block index, so Pallas
    # keeps them VMEM-resident (no per-step re-DMA).
    def full_spec(arr):
        return pl.BlockSpec(arr.shape, lambda i: (0,) * arr.ndim)

    in_specs = [pl.BlockSpec((tb, in_features), lambda i: (i, 0))]
    in_specs += [full_spec(a) for a in flat_params]
    out_spec = pl.BlockSpec((tb, out_features), lambda i: (i, 0))

    # Advisory cost estimate (kept truthful: unpadded batch / output width).
    flops = 2 * B * sum(int(w.shape[0]) * int(w.shape[1]) for w, _ in params)
    transcendentals = B * sum(int(w.shape[1]) for w, _ in params)
    bytes_accessed = (int(x.size) * x.dtype.itemsize
                      + sum(int(a.size) * a.dtype.itemsize for a in flat_params)
                      + B * out_features * 4)

    kernel = functools.partial(_fedpdnn_kernel, act_dtype=act_dtype)

    out = pl.pallas_call(
        kernel,
        out_shape=jax.ShapeDtypeStruct((B, out_features), jnp.float32),
        grid_spec=pltpu.PrefetchScalarGridSpec(
            num_scalar_prefetch=0,
            grid=grid,
            in_specs=in_specs,
            out_specs=out_spec,
        ),
        compiler_params=pltpu.CompilerParams(
            dimension_semantics=("parallel",),
            vmem_limit_bytes=32 * 1024 * 1024,  # working set is only a few MB
        ),
        cost_estimate=pl.CostEstimate(
            flops=flops,
            transcendentals=transcendentals,
            bytes_accessed=bytes_accessed,
        ),
    )(x, *flat_params)   # x passed in its native dtype; cast happens in-kernel

    return out


def init_params(key, in_features, out_features):
    """Deterministic init matching PyTorch Linear's U(-1/sqrt(fan_in), +1/sqrt(fan_in))."""
    dims = [in_features, 128, 64, 64, 32, 32, out_features]
    params = []
    for li in range(len(dims) - 1):
        fan_in, fan_out = dims[li], dims[li + 1]
        key, kw, kb = jax.random.split(key, 3)
        bound = 1.0 / jnp.sqrt(jnp.float32(fan_in))
        w = jax.random.uniform(kw, (fan_in, fan_out), jnp.float32, -bound, bound)
        b = jax.random.uniform(kb, (1, fan_out), jnp.float32, -bound, bound)
        params.append((w, b))
    return params


def _reference_forward(x, params, *, match_kernel=False, act_dtype=jnp.float32):
    """Pure-JAX reference (eval-mode dropout). match_kernel mirrors kernel numerics."""
    h = x.astype(jnp.float32)
    n = len(params)
    for i, (w, b) in enumerate(params):
        if match_kernel:
            h = jnp.dot(h.astype(jnp.bfloat16), w.astype(jnp.bfloat16),
                        preferred_element_type=jnp.float32) + b.astype(jnp.float32)
        else:
            h = h @ w + b
        if i < n - 1:
            h = _selu(h.astype(act_dtype)) if match_kernel else _selu(h)
    return jax.nn.sigmoid(h.astype(jnp.float32))


if __name__ == "__main__":
    key = jax.random.PRNGKey(0)
    in_features, out_features = 32, 8
    batch = 37  # deliberately not tile-aligned: exercises the clipped ragged edge block

    kx, kp = jax.random.split(key)
    x = jax.random.normal(kx, (batch, in_features), jnp.float32)
    params = init_params(kp, in_features, out_features)

    act_dtype = _default_act_dtype()
    out = jax.block_until_ready(fedpdnn_forward(x, params, act_dtype=act_dtype))

    assert out.shape == (batch, out_features)
    assert bool(jnp.all(jnp.isfinite(out))), "non-finite values in valid output rows"

    ref_match = _reference_forward(x, params, match_kernel=True, act_dtype=act_dtype)
    ref_f32 = _reference_forward(x, params)
    assert jnp.allclose(out, ref_match, atol=2e-2, rtol=2e-2), "mismatch vs matched-precision reference"
    assert jnp.allclose(out, ref_f32, atol=5e-2), "mismatch vs f32 reference"

    print("KERNEL_OK")
</pallas_src>

<mosaic_0001>
module attributes {stable_mosaic.version = 11 : i64} {
  func.func @_fedpdnn_kernel(%arg0: i32, %arg1: memref<32x32xf32, #tpu.memory_space<vmem>>, %arg2: memref<32x128xbf16, #tpu.memory_space<vmem>>, %arg3: memref<1x128xf32, #tpu.memory_space<vmem>>, %arg4: memref<128x64xbf16, #tpu.memory_space<vmem>>, %arg5: memref<1x64xf32, #tpu.memory_space<vmem>>, %arg6: memref<64x64xbf16, #tpu.memory_space<vmem>>, %arg7: memref<1x64xf32, #tpu.memory_space<vmem>>, %arg8: memref<64x32xbf16, #tpu.memory_space<vmem>>, %arg9: memref<1x32xf32, #tpu.memory_space<vmem>>, %arg10: memref<32x32xbf16, #tpu.memory_space<vmem>>, %arg11: memref<1x32xf32, #tpu.memory_space<vmem>>, %arg12: memref<32x8xbf16, #tpu.memory_space<vmem>>, %arg13: memref<1x8xf32, #tpu.memory_space<vmem>>, %arg14: memref<32x8xf32, #tpu.memory_space<vmem>>) attributes {dimension_semantics = [#tpu.dimension_semantics<parallel>], iteration_bounds = array<i64: 2>, scalar_prefetch = 0 : i64, scratch_operands = 0 : i64, tpu.core_type = #tpu.core_type<tc>, window_params = [{transform_indices = @transform_0, window_bounds = array<i64: 32, 32>}, {pipeline_mode = #tpu.pipeline_mode<synchronous>, transform_indices = @transform_1, window_bounds = array<i64: 32, 128>}, {pipeline_mode = #tpu.pipeline_mode<synchronous>, transform_indices = @transform_2, window_bounds = array<i64: 1, 128>}, {pipeline_mode = #tpu.pipeline_mode<synchronous>, transform_indices = @transform_3, window_bounds = array<i64: 128, 64>}, {pipeline_mode = #tpu.pipeline_mode<synchronous>, transform_indices = @transform_4, window_bounds = array<i64: 1, 64>}, {pipeline_mode = #tpu.pipeline_mode<synchronous>, transform_indices = @transform_5, window_bounds = array<i64: 64, 64>}, {pipeline_mode = #tpu.pipeline_mode<synchronous>, transform_indices = @transform_6, window_bounds = array<i64: 1, 64>}, {pipeline_mode = #tpu.pipeline_mode<synchronous>, transform_indices = @transform_7, window_bounds = array<i64: 64, 32>}, {pipeline_mode = #tpu.pipeline_mode<synchronous>, transform_indices = @transform_8, window_bounds = array<i64: 1, 32>}, {pipeline_mode = #tpu.pipeline_mode<synchronous>, transform_indices = @transform_9, window_bounds = array<i64: 32, 32>}, {pipeline_mode = #tpu.pipeline_mode<synchronous>, transform_indices = @transform_10, window_bounds = array<i64: 1, 32>}, {pipeline_mode = #tpu.pipeline_mode<synchronous>, transform_indices = @transform_11, window_bounds = array<i64: 32, 8>}, {pipeline_mode = #tpu.pipeline_mode<synchronous>, transform_indices = @transform_12, window_bounds = array<i64: 1, 8>}, {transform_indices = @transform_13, window_bounds = array<i64: 32, 8>}]} {
    %c0 = arith.constant 0 : index
    %c0_0 = arith.constant 0 : index
    %0 = vector.load %arg1[%c0, %c0_0] : memref<32x32xf32, #tpu.memory_space<vmem>>, vector<32x32xf32>
    %1 = arith.truncf %0 : vector<32x32xf32> to vector<32x32xbf16>
    %c0_1 = arith.constant 0 : index
    %c0_2 = arith.constant 0 : index
    %2 = vector.load %arg2[%c0_1, %c0_2] : memref<32x128xbf16, #tpu.memory_space<vmem>>, vector<32x128xbf16>
    %cst = arith.constant dense<0.000000e+00> : vector<32x128xf32>
    %3 = tpu.matmul %1, %2, %cst {dimension_numbers = #tpu.dot_dimension_numbers<[1], [0], [0], [1], [0, 0, 1, 1], [], []>} : vector<32x32xbf16>, vector<32x128xbf16>, vector<32x128xf32> -> vector<32x128xf32>
    %c0_3 = arith.constant 0 : index
    %c0_4 = arith.constant 0 : index
    %4 = vector.load %arg3[%c0_3, %c0_4] : memref<1x128xf32, #tpu.memory_space<vmem>>, vector<1x128xf32>
    %5 = vector.broadcast %4 : vector<1x128xf32> to vector<32x128xf32>
    %6 = arith.addf %3, %5 : vector<32x128xf32>
    %cst_5 = arith.constant 0.000000e+00 : f32
    %7 = vector.broadcast %cst_5 : f32 to vector<32x128xf32>
    %8 = arith.cmpf ogt, %6, %7 : vector<32x128xf32>
    %9 = math.exp %6 : vector<32x128xf32>
    %cst_6 = arith.constant 1.000000e+00 : f32
    %10 = vector.broadcast %cst_6 : f32 to vector<32x128xf32>
    %11 = arith.subf %9, %10 : vector<32x128xf32>
    %cst_7 = arith.constant 1.67326319 : f32
    %12 = vector.broadcast %cst_7 : f32 to vector<32x128xf32>
    %13 = arith.mulf %12, %11 : vector<32x128xf32>
    %14 = arith.select %8, %6, %13 : vector<32x128xi1>, vector<32x128xf32>
    %cst_8 = arith.constant 1.05070102 : f32
    %15 = vector.broadcast %cst_8 : f32 to vector<32x128xf32>
    %16 = arith.mulf %15, %14 : vector<32x128xf32>
    %17 = arith.truncf %16 : vector<32x128xf32> to vector<32x128xbf16>
    %c0_9 = arith.constant 0 : index
    %c0_10 = arith.constant 0 : index
    %18 = vector.load %arg4[%c0_9, %c0_10] : memref<128x64xbf16, #tpu.memory_space<vmem>>, vector<128x64xbf16>
    %cst_11 = arith.constant dense<0.000000e+00> : vector<32x64xf32>
    %19 = tpu.matmul %17, %18, %cst_11 {dimension_numbers = #tpu.dot_dimension_numbers<[1], [0], [0], [1], [0, 0, 1, 1], [], []>} : vector<32x128xbf16>, vector<128x64xbf16>, vector<32x64xf32> -> vector<32x64xf32>
    %c0_12 = arith.constant 0 : index
    %c0_13 = arith.constant 0 : index
    %20 = vector.load %arg5[%c0_12, %c0_13] : memref<1x64xf32, #tpu.memory_space<vmem>>, vector<1x64xf32>
    %21 = vector.broadcast %20 : vector<1x64xf32> to vector<32x64xf32>
    %22 = arith.addf %19, %21 : vector<32x64xf32>
    %cst_14 = arith.constant 0.000000e+00 : f32
    %23 = vector.broadcast %cst_14 : f32 to vector<32x64xf32>
    %24 = arith.cmpf ogt, %22, %23 : vector<32x64xf32>
    %25 = math.exp %22 : vector<32x64xf32>
    %cst_15 = arith.constant 1.000000e+00 : f32
    %26 = vector.broadcast %cst_15 : f32 to vector<32x64xf32>
    %27 = arith.subf %25, %26 : vector<32x64xf32>
    %cst_16 = arith.constant 1.67326319 : f32
    %28 = vector.broadcast %cst_16 : f32 to vector<32x64xf32>
    %29 = arith.mulf %28, %27 : vector<32x64xf32>
    %30 = arith.select %24, %22, %29 : vector<32x64xi1>, vector<32x64xf32>
    %cst_17 = arith.constant 1.05070102 : f32
    %31 = vector.broadcast %cst_17 : f32 to vector<32x64xf32>
    %32 = arith.mulf %31, %30 : vector<32x64xf32>
    %33 = arith.truncf %32 : vector<32x64xf32> to vector<32x64xbf16>
    %c0_18 = arith.constant 0 : index
    %c0_19 = arith.constant 0 : index
    %34 = vector.load %arg6[%c0_18, %c0_19] : memref<64x64xbf16, #tpu.memory_space<vmem>>, vector<64x64xbf16>
    %cst_20 = arith.constant dense<0.000000e+00> : vector<32x64xf32>
    %35 = tpu.matmul %33, %34, %cst_20 {dimension_numbers = #tpu.dot_dimension_numbers<[1], [0], [0], [1], [0, 0, 1, 1], [], []>} : vector<32x64xbf16>, vector<64x64xbf16>, vector<32x64xf32> -> vector<32x64xf32>
    %c0_21 = arith.constant 0 : index
    %c0_22 = arith.constant 0 : index
    %36 = vector.load %arg7[%c0_21, %c0_22] : memref<1x64xf32, #tpu.memory_space<vmem>>, vector<1x64xf32>
    %37 = vector.broadcast %36 : vector<1x64xf32> to vector<32x64xf32>
    %38 = arith.addf %35, %37 : vector<32x64xf32>
    %cst_23 = arith.constant 0.000000e+00 : f32
    %39 = vector.broadcast %cst_23 : f32 to vector<32x64xf32>
    %40 = arith.cmpf ogt, %38, %39 : vector<32x64xf32>
    %41 = math.exp %38 : vector<32x64xf32>
    %cst_24 = arith.constant 1.000000e+00 : f32
    %42 = vector.broadcast %cst_24 : f32 to vector<32x64xf32>
    %43 = arith.subf %41, %42 : vector<32x64xf32>
    %cst_25 = arith.constant 1.67326319 : f32
    %44 = vector.broadcast %cst_25 : f32 to vector<32x64xf32>
    %45 = arith.mulf %44, %43 : vector<32x64xf32>
    %46 = arith.select %40, %38, %45 : vector<32x64xi1>, vector<32x64xf32>
    %cst_26 = arith.constant 1.05070102 : f32
    %47 = vector.broadcast %cst_26 : f32 to vector<32x64xf32>
    %48 = arith.mulf %47, %46 : vector<32x64xf32>
    %49 = arith.truncf %48 : vector<32x64xf32> to vector<32x64xbf16>
    %c0_27 = arith.constant 0 : index
    %c0_28 = arith.constant 0 : index
    %50 = vector.load %arg8[%c0_27, %c0_28] : memref<64x32xbf16, #tpu.memory_space<vmem>>, vector<64x32xbf16>
    %cst_29 = arith.constant dense<0.000000e+00> : vector<32x32xf32>
    %51 = tpu.matmul %49, %50, %cst_29 {dimension_numbers = #tpu.dot_dimension_numbers<[1], [0], [0], [1], [0, 0, 1, 1], [], []>} : vector<32x64xbf16>, vector<64x32xbf16>, vector<32x32xf32> -> vector<32x32xf32>
    %c0_30 = arith.constant 0 : index
    %c0_31 = arith.constant 0 : index
    %52 = vector.load %arg9[%c0_30, %c0_31] : memref<1x32xf32, #tpu.memory_space<vmem>>, vector<1x32xf32>
    %53 = vector.broadcast %52 : vector<1x32xf32> to vector<32x32xf32>
    %54 = arith.addf %51, %53 : vector<32x32xf32>
    %cst_32 = arith.constant 0.000000e+00 : f32
    %55 = vector.broadcast %cst_32 : f32 to vector<32x32xf32>
    %56 = arith.cmpf ogt, %54, %55 : vector<32x32xf32>
    %57 = math.exp %54 : vector<32x32xf32>
    %cst_33 = arith.constant 1.000000e+00 : f32
    %58 = vector.broadcast %cst_33 : f32 to vector<32x32xf32>
    %59 = arith.subf %57, %58 : vector<32x32xf32>
    %cst_34 = arith.constant 1.67326319 : f32
    %60 = vector.broadcast %cst_34 : f32 to vector<32x32xf32>
    %61 = arith.mulf %60, %59 : vector<32x32xf32>
    %62 = arith.select %56, %54, %61 : vector<32x32xi1>, vector<32x32xf32>
    %cst_35 = arith.constant 1.05070102 : f32
    %63 = vector.broadcast %cst_35 : f32 to vector<32x32xf32>
    %64 = arith.mulf %63, %62 : vector<32x32xf32>
    %65 = arith.truncf %64 : vector<32x32xf32> to vector<32x32xbf16>
    %c0_36 = arith.constant 0 : index
    %c0_37 = arith.constant 0 : index
    %66 = vector.load %arg10[%c0_36, %c0_37] : memref<32x32xbf16, #tpu.memory_space<vmem>>, vector<32x32xbf16>
    %cst_38 = arith.constant dense<0.000000e+00> : vector<32x32xf32>
    %67 = tpu.matmul %65, %66, %cst_38 {dimension_numbers = #tpu.dot_dimension_numbers<[1], [0], [0], [1], [0, 0, 1, 1], [], []>} : vector<32x32xbf16>, vector<32x32xbf16>, vector<32x32xf32> -> vector<32x32xf32>
    %c0_39 = arith.constant 0 : index
    %c0_40 = arith.constant 0 : index
    %68 = vector.load %arg11[%c0_39, %c0_40] : memref<1x32xf32, #tpu.memory_space<vmem>>, vector<1x32xf32>
    %69 = vector.broadcast %68 : vector<1x32xf32> to vector<32x32xf32>
    %70 = arith.addf %67, %69 : vector<32x32xf32>
    %cst_41 = arith.constant 0.000000e+00 : f32
    %71 = vector.broadcast %cst_41 : f32 to vector<32x32xf32>
    %72 = arith.cmpf ogt, %70, %71 : vector<32x32xf32>
    %73 = math.exp %70 : vector<32x32xf32>
    %cst_42 = arith.constant 1.000000e+00 : f32
    %74 = vector.broadcast %cst_42 : f32 to vector<32x32xf32>
    %75 = arith.subf %73, %74 : vector<32x32xf32>
    %cst_43 = arith.constant 1.67326319 : f32
    %76 = vector.broadcast %cst_43 : f32 to vector<32x32xf32>
    %77 = arith.mulf %76, %75 : vector<32x32xf32>
    %78 = arith.select %72, %70, %77 : vector<32x32xi1>, vector<32x32xf32>
    %cst_44 = arith.constant 1.05070102 : f32
    %79 = vector.broadcast %cst_44 : f32 to vector<32x32xf32>
    %80 = arith.mulf %79, %78 : vector<32x32xf32>
    %81 = arith.truncf %80 : vector<32x32xf32> to vector<32x32xbf16>
    %c0_45 = arith.constant 0 : index
    %c0_46 = arith.constant 0 : index
    %82 = vector.load %arg12[%c0_45, %c0_46] : memref<32x8xbf16, #tpu.memory_space<vmem>>, vector<32x8xbf16>
    %cst_47 = arith.constant dense<0.000000e+00> : vector<32x8xf32>
    %83 = tpu.matmul %81, %82, %cst_47 {dimension_numbers = #tpu.dot_dimension_numbers<[1], [0], [0], [1], [0, 0, 1, 1], [], []>} : vector<32x32xbf16>, vector<32x8xbf16>, vector<32x8xf32> -> vector<32x8xf32>
    %c0_48 = arith.constant 0 : index
    %c0_49 = arith.constant 0 : index
    %84 = vector.load %arg13[%c0_48, %c0_49] : memref<1x8xf32, #tpu.memory_space<vmem>>, vector<1x8xf32>
    %85 = vector.broadcast %84 : vector<1x8xf32> to vector<32x8xf32>
    %86 = arith.addf %83, %85 : vector<32x8xf32>
    %cst_50 = arith.constant 0.000000e+00 : f32
    %87 = vector.broadcast %cst_50 : f32 to vector<32x8xf32>
    %88 = arith.subf %87, %86 : vector<32x8xf32>
    %89 = math.exp %88 : vector<32x8xf32>
    %cst_51 = arith.constant 1.000000e+00 : f32
    %90 = vector.broadcast %cst_51 : f32 to vector<32x8xf32>
    %91 = arith.addf %90, %89 : vector<32x8xf32>
    %92 = tpu.reciprocal %91 {approx = true} : vector<32x8xf32> -> vector<32x8xf32>
    %c0_52 = arith.constant 0 : index
    %c0_53 = arith.constant 0 : index
    %93 = vector.load %arg14[%c0_52, %c0_53] : memref<32x8xf32, #tpu.memory_space<vmem>>, vector<32x8xf32>
    tpu.vector_store %arg14[%c0_52, %c0_53], %92 {strides = array<i32>} : memref<32x8xf32, #tpu.memory_space<vmem>>, vector<32x8xf32>,
    return
  }
  func.func @transform_0(%arg0: i32) -> (i32, i32) {
    %c0_i32 = arith.constant 0 : i32
    %c0_i32_0 = arith.constant 0 : i32
    return %arg0, %c0_i32 : i32, i32
  }
  func.func @transform_1(%arg0: i32) -> (i32, i32) {
    %c0_i32 = arith.constant 0 : i32
    %c0_i32_0 = arith.constant 0 : i32
    %c0_i32_1 = arith.constant 0 : i32
    return %c0_i32, %c0_i32_0 : i32, i32
  }
  func.func @transform_2(%arg0: i32) -> (i32, i32) {
    %c0_i32 = arith.constant 0 : i32
    %c0_i32_0 = arith.constant 0 : i32
    %c0_i32_1 = arith.constant 0 : i32
    return %c0_i32, %c0_i32_0 : i32, i32
  }
  func.func @transform_3(%arg0: i32) -> (i32, i32) {
    %c0_i32 = arith.constant 0 : i32
    %c0_i32_0 = arith.constant 0 : i32
    %c0_i32_1 = arith.constant 0 : i32
    return %c0_i32, %c0_i32_0 : i32, i32
  }
  func.func @transform_4(%arg0: i32) -> (i32, i32) {
    %c0_i32 = arith.constant 0 : i32
    %c0_i32_0 = arith.constant 0 : i32
    %c0_i32_1 = arith.constant 0 : i32
    return %c0_i32, %c0_i32_0 : i32, i32
  }
  func.func @transform_5(%arg0: i32) -> (i32, i32) {
    %c0_i32 = arith.constant 0 : i32
    %c0_i32_0 = arith.constant 0 : i32
    %c0_i32_1 = arith.constant 0 : i32
    return %c0_i32, %c0_i32_0 : i32, i32
  }
  func.func @transform_6(%arg0: i32) -> (i32, i32) {
    %c0_i32 = arith.constant 0 : i32
    %c0_i32_0 = arith.constant 0 : i32
    %c0_i32_1 = arith.constant 0 : i32
    return %c0_i32, %c0_i32_0 : i32, i32
  }
  func.func @transform_7(%arg0: i32) -> (i32, i32) {
    %c0_i32 = arith.constant 0 : i32
    %c0_i32_0 = arith.constant 0 : i32
    %c0_i32_1 = arith.constant 0 : i32
    return %c0_i32, %c0_i32_0 : i32, i32
  }
  func.func @transform_8(%arg0: i32) -> (i32, i32) {
    %c0_i32 = arith.constant 0 : i32
    %c0_i32_0 = arith.constant 0 : i32
    %c0_i32_1 = arith.constant 0 : i32
    return %c0_i32, %c0_i32_0 : i32, i32
  }
  func.func @transform_9(%arg0: i32) -> (i32, i32) {
    %c0_i32 = arith.constant 0 : i32
    %c0_i32_0 = arith.constant 0 : i32
    %c0_i32_1 = arith.constant 0 : i32
    return %c0_i32, %c0_i32_0 : i32, i32
  }
  func.func @transform_10(%arg0: i32) -> (i32, i32) {
    %c0_i32 = arith.constant 0 : i32
    %c0_i32_0 = arith.constant 0 : i32
    %c0_i32_1 = arith.constant 0 : i32
    return %c0_i32, %c0_i32_0 : i32, i32
  }
  func.func @transform_11(%arg0: i32) -> (i32, i32) {
    %c0_i32 = arith.constant 0 : i32
    %c0_i32_0 = arith.constant 0 : i32
    %c0_i32_1 = arith.constant 0 : i32
    return %c0_i32, %c0_i32_0 : i32, i32
  }
  func.func @transform_12(%arg0: i32) -> (i32, i32) {
    %c0_i32 = arith.constant 0 : i32
    %c0_i32_0 = arith.constant 0 : i32
    %c0_i32_1 = arith.constant 0 : i32
    return %c0_i32, %c0_i32_0 : i32, i32
  }
  func.func @transform_13(%arg0: i32) -> (i32, i32) {
    %c0_i32 = arith.constant 0 : i32
    %c0_i32_0 = arith.constant 0 : i32
    return %arg0, %c0_i32 : i32, i32
  }
}

</mosaic_0001>

<llo_original>
// kernel: tpu_custom_call.1
$region0: #{tpu_custom_call.1}
  #allocation0 [shape = 'u32[]', space=smem, size = 0x4, offset = 0x4, fixed_abs, tag = 'smem constant byte address 0x4 - core index']
  #allocation1 [shape = 'u32[72,128]{1,0:T(1,128)}', space=vmem, size = 0x9000, scoped, tag = 'internal scratch']
  %s0 = inlined_call_operand.vmem [shape: f32[37,32], index: 0, kind: input, shape index: {}]
  %s1 = inlined_call_operand.vmem [shape: bf16[32,128], index: 1, kind: input, shape index: {}]
  %s2 = inlined_call_operand.vmem [shape: f32[1,128], index: 2, kind: input, shape index: {}]
  %s3 = inlined_call_operand.vmem [shape: bf16[128,64], index: 3, kind: input, shape index: {}]
  %s4 = inlined_call_operand.vmem [shape: f32[1,64], index: 4, kind: input, shape index: {}]
  %s5 = inlined_call_operand.vmem [shape: bf16[64,64], index: 5, kind: input, shape index: {}]
  %s6 = inlined_call_operand.vmem [shape: f32[1,64], index: 6, kind: input, shape index: {}]
  %s7 = inlined_call_operand.vmem [shape: bf16[64,32], index: 7, kind: input, shape index: {}]
  %s8 = inlined_call_operand.vmem [shape: f32[1,32], index: 8, kind: input, shape index: {}]
  %s9 = inlined_call_operand.vmem [shape: bf16[32,32], index: 9, kind: input, shape index: {}]
  %s10 = inlined_call_operand.vmem [shape: f32[1,32], index: 10, kind: input, shape index: {}]
  %s11 = inlined_call_operand.vmem [shape: bf16[32,8], index: 11, kind: input, shape index: {}]
  %s12 = inlined_call_operand.vmem [shape: f32[1,8], index: 12, kind: input, shape index: {}]
  %s13 = inlined_call_operand.vmem [shape: f32[37,8], index: 13, kind: output, shape index: {}]
  %s14 = sld [smem:[#allocation0]]
  $region133: #{tpu_custom_call.1} parent=0
    _
  %s16 = ssub.s32 1, %s14
  %s17 = scalar_select 0, %s16, %s14
  $region1: #{tpu_custom_call.1} parent=0
    #allocation2 [shape = 'u8[32768]{0}', space=vmem, size = 0x8000, scoped, tag = 'output window, operand 0']
    loop: start=0, step=1, limit=4
    $region2: #{tpu_custom_call.1} parent=1 // loop_pre_header
      _
    $region3: #{tpu_custom_call.1} parent=1 // loop_header
      %s19 = sphi 0, %s23
      %p20 = scmp.ge.s32.totalorder %s19, 4
      %s29 = sphi 0, %s31
      %s32 = sphi 0, %s29
      %s33 = sphi 0, %s32
      %s49 = sphi 0, %s33
      %s53 = sphi 0, %s53
      %s55 = sphi 0, %s53
      %s56 = sphi 0, %s55
      %s70 = sphi 0, %s56
      %s74 = sphi 0, %s74
      %s76 = sphi 0, %s74
      %s77 = sphi 0, %s76
      %s91 = sphi 0, %s77
      %s95 = sphi 0, %s95
      %s97 = sphi 0, %s95
      %s98 = sphi 0, %s97
      %s112 = sphi 0, %s98
      %s116 = sphi 0, %s116
      %s118 = sphi 0, %s116
      %s119 = sphi 0, %s118
      %s133 = sphi 0, %s119
      %s137 = sphi 0, %s137
      %s139 = sphi 0, %s137
      %s140 = sphi 0, %s139
      %s154 = sphi 0, %s140
      %s158 = sphi 0, %s158
      %s160 = sphi 0, %s158
      %s161 = sphi 0, %s160
      %s175 = sphi 0, %s161
      %s179 = sphi 0, %s179
      %s181 = sphi 0, %s179
      %s182 = sphi 0, %s181
      %s196 = sphi 0, %s182
      %s200 = sphi 0, %s200
      %s202 = sphi 0, %s200
      %s203 = sphi 0, %s202
      %s217 = sphi 0, %s203
      %s221 = sphi 0, %s221
      %s223 = sphi 0, %s221
      %s224 = sphi 0, %s223
      %s238 = sphi 0, %s224
      %s242 = sphi 0, %s242
      %s244 = sphi 0, %s242
      %s245 = sphi 0, %s244
      %s259 = sphi 0, %s245
      %s263 = sphi 0, %s263
      %s265 = sphi 0, %s263
      %s266 = sphi 0, %s265
      %s280 = sphi 0, %s266
      %s284 = sphi 0, %s284
      %s286 = sphi 0, %s284
      %s287 = sphi 0, %s286
      %s301 = sphi 0, %s287
      %s307 = sphi 0, %s309
      %s310 = sphi 0, %s307
      %s311 = sphi 0, %s310
      %s327 = sphi 0, %s311
    $region4: #{tpu_custom_call.1} parent=1 // loop_header_branch
      %22 = sbr.rel (%p20) target = $region8
    $region5: #{tpu_custom_call.1} parent=1 // loop_body
      %s24 = ssub.s32 %s19, 1
      %s25 = ssub.s32 %s19, 2
      %s26 = sadd.s32 %s19, 1
      %s27 = ssub.s32 %s19, %s26
      %p28 = scmp.eq.s32.totalorder %s27, 0
      %s30 = sadd.s32 %s29, 1
      %s31 = scalar_select %p28, %s29, %s30
      %p34 = pneg %p28
      %p35 = scmp.eq.s32.totalorder %s19, 1
      %p36 = por %p34, %p35
      %p37 = scmp.ne.s32.totalorder %s29, %s32
      %p38 = scmp.eq.s32.totalorder %s19, 0
      %p39 = por %p37, %p38
      %p40 = scmp.ne.s32.totalorder %s29, %s32
      %p41 = scmp.eq.s32.totalorder %s24, 1
      %p42 = por %p40, %p41
      %p43 = scmp.ne.s32.totalorder %s32, %s33
      %p44 = scmp.eq.s32.totalorder %s24, 0
      %p45 = por %p43, %p44
      %p46 = scmp.ne.s32.totalorder %s32, %s33
      %p47 = scmp.eq.s32.totalorder %s25, 1
      %p48 = por %p46, %p47
      %p50 = scmp.ne.s32.totalorder %s33, %s49
      %p51 = scmp.eq.s32.totalorder %s25, 0
      %p52 = por %p50, %p51
      %s54 = sadd.s32 %s53, 1
      %p57 = scmp.eq.s32.totalorder %s19, 1
      %p58 = scmp.ne.s32.totalorder %s53, %s55
      %p59 = scmp.eq.s32.totalorder %s19, 0
      %p60 = por %p58, %p59
      %p61 = scmp.ne.s32.totalorder %s53, %s55
      %p62 = scmp.eq.s32.totalorder %s24, 1
      %p63 = por %p61, %p62
      %p64 = scmp.ne.s32.totalorder %s55, %s56
      %p65 = scmp.eq.s32.totalorder %s24, 0
      %p66 = por %p64, %p65
      %p67 = scmp.ne.s32.totalorder %s55, %s56
      %p68 = scmp.eq.s32.totalorder %s25, 1
      %p69 = por %p67, %p68
      %p71 = scmp.ne.s32.totalorder %s56, %s70
      %p72 = scmp.eq.s32.totalorder %s25, 0
      %p73 = por %p71, %p72
      %s75 = sadd.s32 %s74, 1
      %p78 = scmp.eq.s32.totalorder %s19, 1
      %p79 = scmp.ne.s32.totalorder %s74, %s76
      %p80 = scmp.eq.s32.totalorder %s19, 0
      %p81 = por %p79, %p80
      %p82 = scmp.ne.s32.totalorder %s74, %s76
      %p83 = scmp.eq.s32.totalorder %s24, 1
      %p84 = por %p82, %p83
      %p85 = scmp.ne.s32.totalorder %s76, %s77
      %p86 = scmp.eq.s32.totalorder %s24, 0
      %p87 = por %p85, %p86
      %p88 = scmp.ne.s32.totalorder %s76, %s77
      %p89 = scmp.eq.s32.totalorder %s25, 1
      %p90 = por %p88, %p89
      %p92 = scmp.ne.s32.totalorder %s77, %s91
      %p93 = scmp.eq.s32.totalorder %s25, 0
      %p94 = por %p92, %p93
      %s96 = sadd.s32 %s95, 1
      %p99 = scmp.eq.s32.totalorder %s19, 1
      %p100 = scmp.ne.s32.totalorder %s95, %s97
      %p101 = scmp.eq.s32.totalorder %s19, 0
      %p102 = por %p100, %p101
      %p103 = scmp.ne.s32.totalorder %s95, %s97
      %p104 = scmp.eq.s32.totalorder %s24, 1
      %p105 = por %p103, %p104
      %p106 = scmp.ne.s32.totalorder %s97, %s98
      %p107 = scmp.eq.s32.totalorder %s24, 0
      %p108 = por %p106, %p107
      %p109 = scmp.ne.s32.totalorder %s97, %s98
      %p110 = scmp.eq.s32.totalorder %s25, 1
      %p111 = por %p109, %p110
      %p113 = scmp.ne.s32.totalorder %s98, %s112
      %p114 = scmp.eq.s32.totalorder %s25, 0
      %p115 = por %p113, %p114
      %s117 = sadd.s32 %s116, 1
      %p120 = scmp.eq.s32.totalorder %s19, 1
      %p121 = scmp.ne.s32.totalorder %s116, %s118
      %p122 = scmp.eq.s32.totalorder %s19, 0
      %p123 = por %p121, %p122
      %p124 = scmp.ne.s32.totalorder %s116, %s118
      %p125 = scmp.eq.s32.totalorder %s24, 1
      %p126 = por %p124, %p125
      %p127 = scmp.ne.s32.totalorder %s118, %s119
      %p128 = scmp.eq.s32.totalorder %s24, 0
      %p129 = por %p127, %p128
      %p130 = scmp.ne.s32.totalorder %s118, %s119
      %p131 = scmp.eq.s32.totalorder %s25, 1
      %p132 = por %p130, %p131
      %p134 = scmp.ne.s32.totalorder %s119, %s133
      %p135 = scmp.eq.s32.totalorder %s25, 0
      %p136 = por %p134, %p135
      %s138 = sadd.s32 %s137, 1
      %p141 = scmp.eq.s32.totalorder %s19, 1
      %p142 = scmp.ne.s32.totalorder %s137, %s139
      %p143 = scmp.eq.s32.totalorder %s19, 0
      %p144 = por %p142, %p143
      %p145 = scmp.ne.s32.totalorder %s137, %s139
      %p146 = scmp.eq.s32.totalorder %s24, 1
      %p147 = por %p145, %p146
      %p148 = scmp.ne.s32.totalorder %s139, %s140
      %p149 = scmp.eq.s32.totalorder %s24, 0
      %p150 = por %p148, %p149
      %p151 = scmp.ne.s32.totalorder %s139, %s140
      %p152 = scmp.eq.s32.totalorder %s25, 1
      %p153 = por %p151, %p152
      %p155 = scmp.ne.s32.totalorder %s140, %s154
      %p156 = scmp.eq.s32.totalorder %s25, 0
      %p157 = por %p155, %p156
      %s159 = sadd.s32 %s158, 1
      %p162 = scmp.eq.s32.totalorder %s19, 1
      %p163 = scmp.ne.s32.totalorder %s158, %s160
      %p164 = scmp.eq.s32.totalorder %s19, 0
      %p165 = por %p163, %p164
      %p166 = scmp.ne.s32.totalorder %s158, %s160
      %p167 = scmp.eq.s32.totalorder %s24, 1
      %p168 = por %p166, %p167
      %p169 = scmp.ne.s32.totalorder %s160, %s161
      %p170 = scmp.eq.s32.totalorder %s24, 0
      %p171 = por %p169, %p170
      %p172 = scmp.ne.s32.totalorder %s160, %s161
      %p173 = scmp.eq.s32.totalorder %s25, 1
      %p174 = por %p172, %p173
      %p176 = scmp.ne.s32.totalorder %s161, %s175
      %p177 = scmp.eq.s32.totalorder %s25, 0
      %p178 = por %p176, %p177
      %s180 = sadd.s32 %s179, 1
      %p183 = scmp.eq.s32.totalorder %s19, 1
      %p184 = scmp.ne.s32.totalorder %s179, %s181
      %p185 = scmp.eq.s32.totalorder %s19, 0
      %p186 = por %p184, %p185
      %p187 = scmp.ne.s32.totalorder %s179, %s181
      %p188 = scmp.eq.s32.totalorder %s24, 1
      %p189 = por %p187, %p188
      %p190 = scmp.ne.s32.totalorder %s181, %s182
      %p191 = scmp.eq.s32.totalorder %s24, 0
      %p192 = por %p190, %p191
      %p193 = scmp.ne.s32.totalorder %s181, %s182
      %p194 = scmp.eq.s32.totalorder %s25, 1
      %p195 = por %p193, %p194
      %p197 = scmp.ne.s32.totalorder %s182, %s196
      %p198 = scmp.eq.s32.totalorder %s25, 0
      %p199 = por %p197, %p198
      %s201 = sadd.s32 %s200, 1
      %p204 = scmp.eq.s32.totalorder %s19, 1
      %p205 = scmp.ne.s32.totalorder %s200, %s202
      %p206 = scmp.eq.s32.totalorder %s19, 0
      %p207 = por %p205, %p206
      %p208 = scmp.ne.s32.totalorder %s200, %s202
      %p209 = scmp.eq.s32.totalorder %s24, 1
      %p210 = por %p208, %p209
      %p211 = scmp.ne.s32.totalorder %s202, %s203
      %p212 = scmp.eq.s32.totalorder %s24, 0
      %p213 = por %p211, %p212
      %p214 = scmp.ne.s32.totalorder %s202, %s203
      %p215 = scmp.eq.s32.totalorder %s25, 1
      %p216 = por %p214, %p215
      %p218 = scmp.ne.s32.totalorder %s203, %s217
      %p219 = scmp.eq.s32.totalorder %s25, 0
      %p220 = por %p218, %p219
      %s222 = sadd.s32 %s221, 1
      %p225 = scmp.eq.s32.totalorder %s19, 1
      %p226 = scmp.ne.s32.totalorder %s221, %s223
      %p227 = scmp.eq.s32.totalorder %s19, 0
      %p228 = por %p226, %p227
      %p229 = scmp.ne.s32.totalorder %s221, %s223
      %p230 = scmp.eq.s32.totalorder %s24, 1
      %p231 = por %p229, %p230
      %p232 = scmp.ne.s32.totalorder %s223, %s224
      %p233 = scmp.eq.s32.totalorder %s24, 0
      %p234 = por %p232, %p233
      %p235 = scmp.ne.s32.totalorder %s223, %s224
      %p236 = scmp.eq.s32.totalorder %s25, 1
      %p237 = por %p235, %p236
      %p239 = scmp.ne.s32.totalorder %s224, %s238
      %p240 = scmp.eq.s32.totalorder %s25, 0
      %p241 = por %p239, %p240
      %s243 = sadd.s32 %s242, 1
      %p246 = scmp.eq.s32.totalorder %s19, 1
      %p247 = scmp.ne.s32.totalorder %s242, %s244
      %p248 = scmp.eq.s32.totalorder %s19, 0
      %p249 = por %p247, %p248
      %p250 = scmp.ne.s32.totalorder %s242, %s244
      %p251 = scmp.eq.s32.totalorder %s24, 1
      %p252 = por %p250, %p251
      %p253 = scmp.ne.s32.totalorder %s244, %s245
      %p254 = scmp.eq.s32.totalorder %s24, 0
      %p255 = por %p253, %p254
      %p256 = scmp.ne.s32.totalorder %s244, %s245
      %p257 = scmp.eq.s32.totalorder %s25, 1
      %p258 = por %p256, %p257
      %p260 = scmp.ne.s32.totalorder %s245, %s259
      %p261 = scmp.eq.s32.totalorder %s25, 0
      %p262 = por %p260, %p261
      %s264 = sadd.s32 %s263, 1
      %p267 = scmp.eq.s32.totalorder %s19, 1
      %p268 = scmp.ne.s32.totalorder %s263, %s265
      %p269 = scmp.eq.s32.totalorder %s19, 0
      %p270 = por %p268, %p269
      %p271 = scmp.ne.s32.totalorder %s263, %s265
      %p272 = scmp.eq.s32.totalorder %s24, 1
      %p273 = por %p271, %p272
      %p274 = scmp.ne.s32.totalorder %s265, %s266
      %p275 = scmp.eq.s32.totalorder %s24, 0
      %p276 = por %p274, %p275
      %p277 = scmp.ne.s32.totalorder %s265, %s266
      %p278 = scmp.eq.s32.totalorder %s25, 1
      %p279 = por %p277, %p278
      %p281 = scmp.ne.s32.totalorder %s266, %s280
      %p282 = scmp.eq.s32.totalorder %s25, 0
      %p283 = por %p281, %p282
      %s285 = sadd.s32 %s284, 1
      %p288 = scmp.eq.s32.totalorder %s19, 1
      %p289 = scmp.ne.s32.totalorder %s284, %s286
      %p290 = scmp.eq.s32.totalorder %s19, 0
      %p291 = por %p289, %p290
      %p292 = scmp.ne.s32.totalorder %s284, %s286
      %p293 = scmp.eq.s32.totalorder %s24, 1
      %p294 = por %p292, %p293
      %p295 = scmp.ne.s32.totalorder %s286, %s287
      %p296 = scmp.eq.s32.totalorder %s24, 0
      %p297 = por %p295, %p296
      %p298 = scmp.ne.s32.totalorder %s286, %s287
      %p299 = scmp.eq.s32.totalorder %s25, 1
      %p300 = por %p298, %p299
      %p302 = scmp.ne.s32.totalorder %s287, %s301
      %p303 = scmp.eq.s32.totalorder %s25, 0
      %p304 = por %p302, %p303
      %s305 = ssub.s32 %s19, %s26
      %p306 = scmp.eq.s32.totalorder %s305, 0
      %s308 = sadd.s32 %s307, 1
      %s309 = scalar_select %p306, %s307, %s308
      %p312 = pneg %p306
      %p313 = scmp.eq.s32.totalorder %s19, 1
      %p314 = por %p312, %p313
      %p315 = scmp.ne.s32.totalorder %s307, %s310
      %p316 = scmp.eq.s32.totalorder %s19, 0
      %p317 = por %p315, %p316
      %p318 = scmp.ne.s32.totalorder %s307, %s310
      %p319 = scmp.eq.s32.totalorder %s24, 1
      %p320 = por %p318, %p319
      %p321 = scmp.ne.s32.totalorder %s310, %s311
      %p322 = scmp.eq.s32.totalorder %s24, 0
      %p323 = por %p321, %p322
      %p324 = scmp.ne.s32.totalorder %s310, %s311
      %p325 = scmp.eq.s32.totalorder %s25, 1
      %p326 = por %p324, %p325
      %p328 = scmp.ne.s32.totalorder %s311, %s327
      %p329 = scmp.eq.s32.totalorder %s25, 0
      %p330 = por %p328, %p329
      %p331 = scmp.le.s32.totalorder 1, %s19
      %p332 = scmp.lt.s32.totalorder %s19, 3
      %p333 = pnand %p331, %p332
      %p334 = pneg %p333
      // Predicated region
      $region9: #{tpu_custom_call.1} parent=5 // pred_check
        _
      $region10: #{tpu_custom_call.1} parent=5 // pred_check_branch
        %336 = sbr.rel (%p333) target = $region12
      $region11: #{tpu_custom_call.1} parent=5 // pred_region
        %s337 = ssub.s32 %s19, 1
        // Predicated region
        $region13: #{tpu_custom_call.1} parent=11 // pred_check
          %p338 = pneg %p66
        $region14: #{tpu_custom_call.1} parent=11 // pred_check_branch
          %340 = sbr.rel (%p338) target = $region16
        $region15: #{tpu_custom_call.1} parent=11 // pred_region
          _
        $region16: #{tpu_custom_call.1} parent=11 // pred_fallthru
          _
        // Predicated region
        $region17: #{tpu_custom_call.1} parent=11 // pred_check
          %p341 = pneg %p87
        $region18: #{tpu_custom_call.1} parent=11 // pred_check_branch
          %343 = sbr.rel (%p341) target = $region20
        $region19: #{tpu_custom_call.1} parent=11 // pred_region
          _
        $region20: #{tpu_custom_call.1} parent=11 // pred_fallthru
          _
        // Predicated region
        $region21: #{tpu_custom_call.1} parent=11 // pred_check
          %p344 = pneg %p108
        $region22: #{tpu_custom_call.1} parent=11 // pred_check_branch
          %346 = sbr.rel (%p344) target = $region24
        $region23: #{tpu_custom_call.1} parent=11 // pred_region
          _
        $region24: #{tpu_custom_call.1} parent=11 // pred_fallthru
          _
        // Predicated region
        $region25: #{tpu_custom_call.1} parent=11 // pred_check
          %p347 = pneg %p129
        $region26: #{tpu_custom_call.1} parent=11 // pred_check_branch
          %349 = sbr.rel (%p347) target = $region28
        $region27: #{tpu_custom_call.1} parent=11 // pred_region
          _
        $region28: #{tpu_custom_call.1} parent=11 // pred_fallthru
          _
        // Predicated region
        $region29: #{tpu_custom_call.1} parent=11 // pred_check
          %p350 = pneg %p150
        $region30: #{tpu_custom_call.1} parent=11 // pred_check_branch
          %352 = sbr.rel (%p350) target = $region32
        $region31: #{tpu_custom_call.1} parent=11 // pred_region
          _
        $region32: #{tpu_custom_call.1} parent=11 // pred_fallthru
          _
        // Predicated region
        $region33: #{tpu_custom_call.1} parent=11 // pred_check
          %p353 = pneg %p171
        $region34: #{tpu_custom_call.1} parent=11 // pred_check_branch
          %355 = sbr.rel (%p353) target = $region36
        $region35: #{tpu_custom_call.1} parent=11 // pred_region
          _
        $region36: #{tpu_custom_call.1} parent=11 // pred_fallthru
          _
        // Predicated region
        $region37: #{tpu_custom_call.1} parent=11 // pred_check
          %p356 = pneg %p192
        $region38: #{tpu_custom_call.1} parent=11 // pred_check_branch
          %358 = sbr.rel (%p356) target = $region40
        $region39: #{tpu_custom_call.1} parent=11 // pred_region
          _
        $region40: #{tpu_custom_call.1} parent=11 // pred_fallthru
          _
        // Predicated region
        $region41: #{tpu_custom_call.1} parent=11 // pred_check
          %p359 = pneg %p213
        $region42: #{tpu_custom_call.1} parent=11 // pred_check_branch
          %361 = sbr.rel (%p359) target = $region44
        $region43: #{tpu_custom_call.1} parent=11 // pred_region
          _
        $region44: #{tpu_custom_call.1} parent=11 // pred_fallthru
          _
        // Predicated region
        $region45: #{tpu_custom_call.1} parent=11 // pred_check
          %p362 = pneg %p234
        $region46: #{tpu_custom_call.1} parent=11 // pred_check_branch
          %364 = sbr.rel (%p362) target = $region48
        $region47: #{tpu_custom_call.1} parent=11 // pred_region
          _
        $region48: #{tpu_custom_call.1} parent=11 // pred_fallthru
          _
        // Predicated region
        $region49: #{tpu_custom_call.1} parent=11 // pred_check
          %p365 = pneg %p255
        $region50: #{tpu_custom_call.1} parent=11 // pred_check_branch
          %367 = sbr.rel (%p365) target = $region52
        $region51: #{tpu_custom_call.1} parent=11 // pred_region
          _
        $region52: #{tpu_custom_call.1} parent=11 // pred_fallthru
          _
        // Predicated region
        $region53: #{tpu_custom_call.1} parent=11 // pred_check
          %p368 = pneg %p276
        $region54: #{tpu_custom_call.1} parent=11 // pred_check_branch
          %370 = sbr.rel (%p368) target = $region56
        $region55: #{tpu_custom_call.1} parent=11 // pred_region
          _
        $region56: #{tpu_custom_call.1} parent=11 // pred_fallthru
          _
        // Predicated region
        $region57: #{tpu_custom_call.1} parent=11 // pred_check
          %p371 = pneg %p297
        $region58: #{tpu_custom_call.1} parent=11 // pred_check_branch
          %373 = sbr.rel (%p371) target = $region60
        $region59: #{tpu_custom_call.1} parent=11 // pred_region
          _
        $region60: #{tpu_custom_call.1} parent=11 // pred_fallthru
          _
      $region12: #{tpu_custom_call.1} parent=5 // pred_fallthru
        _
      %p374 = scmp.lt.s32.totalorder %s19, 2
      // Predicated region
      $region61: #{tpu_custom_call.1} parent=5 // pred_check
        %p375 = pneg %p374
      $region62: #{tpu_custom_call.1} parent=5 // pred_check_branch
        %377 = sbr.rel (%p375) target = $region64
      $region63: #{tpu_custom_call.1} parent=5 // pred_region
        // Predicated region
        $region65: #{tpu_custom_call.1} parent=63 // pred_check
          %p378 = pneg %p39
        $region66: #{tpu_custom_call.1} parent=63 // pred_check_branch
          %380 = sbr.rel (%p378) target = $region68
        $region67: #{tpu_custom_call.1} parent=63 // pred_region
          %s381 = smul.u32 4, %s19
          %s382 = ssub.s32 5, %s381
          %p383 = scmp.lt.s32.totalorder %s382, 4
          %s384 = scalar_select %p383, %s382, 4
          %s385 = smul.u32 8, %s384
          %p386 = scmp.lt.s32.totalorder %s381, 4
          %s387 = scalar_select %p386, %s381, 4
          %s388 = smul.addr %s387, 8
          %s389 = scalar_lea.vmem %s0, %s388
          %s390 = smul.u32 4, %s19
          %s391 = ssub.s32 5, %s390
          %p392 = scmp.lt.s32.totalorder %s391, 4
          %s393 = scalar_select %p392, %s391, 4
          %s394 = smul.u32 8, %s393
        $region68: #{tpu_custom_call.1} parent=63 // pred_fallthru
          _
      $region64: #{tpu_custom_call.1} parent=5 // pred_fallthru
        _
      %p395 = scmp.le.s32.totalorder 1, %s19
      %p396 = scmp.lt.s32.totalorder %s19, 3
      %p397 = pnand %p395, %p396
      %p398 = pneg %p397
      // Predicated region
      $region69: #{tpu_custom_call.1} parent=5 // pred_check
        _
      $region70: #{tpu_custom_call.1} parent=5 // pred_check_branch
        %400 = sbr.rel (%p397) target = $region72
      $region71: #{tpu_custom_call.1} parent=5 // pred_region
        %s401 = ssub.s32 %s19, 1
        %s402 = smul.u32 4, %s24
        %s403 = ssub.s32 5, %s402
        %p404 = scmp.lt.s32.totalorder %s403, 4
        %s405 = scalar_select %p404, %s403, 4
        %s406 = smul.u32 8, %s405
        %p407 = scmp.lt.s32.totalorder %s402, 4
        %s408 = scalar_select %p407, %s402, 4
        %s409 = smul.addr %s408, 8
        %s410 = scalar_lea.vmem %s0, %s409
        %p411 = pneg %p45
        %p412 = pneg %p42
        %p413 = pneg %p66
        %p414 = pneg %p63
        %p415 = pneg %p87
        %p416 = pneg %p84
        %p417 = pneg %p108
        %p418 = pneg %p105
        %p419 = pneg %p129
        %p420 = pneg %p126
        %p421 = pneg %p150
        %p422 = pneg %p147
        %p423 = pneg %p171
        %p424 = pneg %p168
        %p425 = pneg %p192
        %p426 = pneg %p189
        %p427 = pneg %p213
        %p428 = pneg %p210
        %p429 = pneg %p234
        %p430 = pneg %p231
        %p431 = pneg %p255
        %p432 = pneg %p252
        %p433 = pneg %p276
        %p434 = pneg %p273
        %p435 = pneg %p297
        %p436 = pneg %p294
        %p437 = pneg %p323
        %p438 = pneg %p320
        %s439 = sand.u32 %s310, 1
        %s440 = sand.u32 %s310, 1
        %s441 = smul.addr %s440, 32
        %s442 = scalar_lea.vmem [#allocation2], %s441
        %s443 = smul.u32 4, %s24
        %s444 = ssub.s32 5, %s443
        %p445 = scmp.lt.s32.totalorder %s444, 4
        %s446 = scalar_select %p445, %s444, 4
        %s447 = smul.u32 8, %s446
        %p448 = scmp.lt.s32.totalorder %s443, 4
        %s449 = scalar_select %p448, %s443, 4
        %s450 = smul.addr %s449, 8
        %s451 = scalar_lea.vmem %s0, %s450
        %s452 = smul.u32 4, %s24
        %s453 = ssub.s32 5, %s452
        %p454 = scmp.lt.s32.totalorder %s453, 4
        %s455 = scalar_select %p454, %s453, 4
        %s456 = smul.u32 8, %s455
        %s457 = smul.u32 4, %s24
        %s458 = ssub.s32 5, %s457
        %p459 = scmp.lt.s32.totalorder %s458, 4
        %s460 = scalar_select %p459, %s458, 4
        %s461 = smul.u32 8, %s460
        %v463 = vld [vmem:[%s451] sm:$0xff]
        %v464 = vld [vmem:[%s451 + $0x8] sm:$0xff]
        %v465 = vld [vmem:[%s451 + $0x10] sm:$0xff]
        %v466 = vld [vmem:[%s451 + $0x18] sm:$0xff]
        %v467 = vpack.c.bf16 %v464, %v463
        %v468 = vpack.c.bf16 %v466, %v465
        %v469 = vld [vmem:[%s1] sm:$0xf]
        %v470 = vld [vmem:[%s1 + $0x4] sm:$0xf]
        %v471 = vld [vmem:[%s1 + $0x8] sm:$0xf]
        %v472 = vld [vmem:[%s1 + $0xc] sm:$0xf]
        %v473 = vld [vmem:[%s2] sm:$0x1]
        %v475 = vperm.slane %v473, 0
        %v481 = vunpack.c.l.b16 %v469
        %v482 = vunpack.c.l.b16 %v470
        %v483 = vunpack.c.l.b16 %v471
        %v484 = vunpack.c.l.b16 %v472
        %v485 = vpack.c.b16 %v482, %v481
        %v486 = vpack.c.b16 %v484, %v483
        %vm489 = vcmask 261120
        %v491 = vsel %vm489, %v467, 0
        %v494 = vsel %vm489, %v468, 0
        %496 = vmatpush.bf16.msra.mxu0 0
        %497 = vmatpush.bf16.msra.mxu0 0
        %498 = vmatpush.bf16.msra.mxu0 0
        %499 = vmatpush.bf16.msra.mxu0 0
        %500 = vmatpush.bf16.msra.mxu0 0
        %501 = vmatpush.bf16.msra.mxu0 0
        %502 = vmatpush.bf16.msra.mxu0 %v486
        %503 = vmatpush.bf16.msra.mxu0 %v485
        %504 = vmatmul.bf16.gmra.mxu0 %v491
        %v505 = vpop.f32.mrf.mxu0
        %v506 = vadd.f32 %v475, %v505
        %v507 = vpop.f32.mrf.mxu0
        %v508 = vadd.f32 %v475, %v507
        %509 = vmatmul.bf16.gmra.mxu0 %v494
        %v510 = vpop.f32.mrf.mxu0
        %v511 = vadd.f32 %v475, %v510
        %v512 = vpop.f32.mrf.mxu0
        %v513 = vadd.f32 %v475, %v512
        %514 = vdwg.mxu0
        %vm515 = vcmp.gt.f32.partialorder %v506, 0.0
        %vm516 = vcmp.gt.f32.partialorder %v508, 0.0
        %vm517 = vcmp.gt.f32.partialorder %v511, 0.0
        %vm518 = vcmp.gt.f32.partialorder %v513, 0.0
        %v519 = vmul.f32 %v506, 1.442695
        %v520 = vpow.pop %v519
        %v521 = vmul.f32 %v508, 1.442695
        %v522 = vpow.pop %v521
        %v523 = vmul.f32 %v511, 1.442695
        %v524 = vpow.pop %v523
        %v525 = vmul.f32 %v513, 1.442695
        %v526 = vpow.pop %v525
        %v527 = vsub.f32 %v520, 1.0
        %v528 = vsub.f32 %v522, 1.0
        %v529 = vsub.f32 %v524, 1.0
        %v530 = vsub.f32 %v526, 1.0
        %v531 = vmul.f32 %v527, 1.6732632
        %v532 = vmul.f32 %v528, 1.6732632
        %v533 = vmul.f32 %v529, 1.6732632
        %v534 = vmul.f32 %v530, 1.6732632
        %v535 = vsel %vm515, %v506, %v531
        %v536 = vsel %vm516, %v508, %v532
        %v537 = vsel %vm517, %v511, %v533
        %v538 = vsel %vm518, %v513, %v534
        %v539 = vmul.f32 %v535, 1.050701
        %v540 = vmul.f32 %v536, 1.050701
        %v541 = vmul.f32 %v537, 1.050701
        %v542 = vmul.f32 %v538, 1.050701
        %v543 = vpack.c.bf16 %v540, %v539
        %v544 = vpack.c.bf16 %v542, %v541
        %v545 = vld [vmem:[%s3] sm:$0xf]
        %v546 = vld [vmem:[%s3 + $0x4] sm:$0xf]
        %v547 = vld [vmem:[%s3 + $0x8] sm:$0xf]
        %v548 = vld [vmem:[%s3 + $0xc] sm:$0xf]
        %v549 = vld [vmem:[%s3 + $0x10] sm:$0xf]
        %v550 = vld [vmem:[%s3 + $0x14] sm:$0xf]
        %v551 = vld [vmem:[%s3 + $0x18] sm:$0xf]
        %v552 = vld [vmem:[%s3 + $0x1c] sm:$0xf]
        %v553 = vld [vmem:[%s3 + $0x20] sm:$0xf]
        %v554 = vld [vmem:[%s3 + $0x24] sm:$0xf]
        %v555 = vld [vmem:[%s3 + $0x28] sm:$0xf]
        %v556 = vld [vmem:[%s3 + $0x2c] sm:$0xf]
        %v557 = vld [vmem:[%s3 + $0x30] sm:$0xf]
        %v558 = vld [vmem:[%s3 + $0x34] sm:$0xf]
        %v559 = vld [vmem:[%s3 + $0x38] sm:$0xf]
        %v560 = vld [vmem:[%s3 + $0x3c] sm:$0xf]
        %v561 = vld [vmem:[%s4] sm:$0x1]
        %v563 = vperm.slane %v561, 0
        %v581 = vunpack.c.l.b16 %v545
        %v582 = vunpack.c.l.b16 %v546
        %v583 = vunpack.c.l.b16 %v547
        %v584 = vunpack.c.l.b16 %v548
        %v585 = vunpack.c.l.b16 %v549
        %v586 = vunpack.c.l.b16 %v550
        %v587 = vunpack.c.l.b16 %v551
        %v588 = vunpack.c.l.b16 %v552
        %v589 = vunpack.c.l.b16 %v553
        %v590 = vunpack.c.l.b16 %v554
        %v591 = vunpack.c.l.b16 %v555
        %v592 = vunpack.c.l.b16 %v556
        %v593 = vunpack.c.l.b16 %v557
        %v594 = vunpack.c.l.b16 %v558
        %v595 = vunpack.c.l.b16 %v559
        %v596 = vunpack.c.l.b16 %v560
        %v597 = vpack.c.b16 %v582, %v581
        %v598 = vpack.c.b16 %v584, %v583
        %v599 = vpack.c.b16 %v586, %v585
        %v600 = vpack.c.b16 %v588, %v587
        %v601 = vpack.c.b16 %v590, %v589
        %v602 = vpack.c.b16 %v592, %v591
        %v603 = vpack.c.b16 %v594, %v593
        %v604 = vpack.c.b16 %v596, %v595
        %613 = vmatpush.bf16.msra.mxu0 %v604
        %614 = vmatpush.bf16.msra.mxu0 %v603
        %615 = vmatpush.bf16.msra.mxu0 %v602
        %616 = vmatpush.bf16.msra.mxu0 %v601
        %617 = vmatpush.bf16.msra.mxu0 %v600
        %618 = vmatpush.bf16.msra.mxu0 %v599
        %619 = vmatpush.bf16.msra.mxu0 %v598
        %620 = vmatpush.bf16.msra.mxu0 %v597
        %621 = vmatmul.bf16.gmra.mxu0 %v543
        %v622 = vpop.f32.mrf.mxu0
        %v623 = vadd.f32 %v563, %v622
        %v624 = vpop.f32.mrf.mxu0
        %v625 = vadd.f32 %v563, %v624
        %626 = vmatmul.bf16.gmra.mxu0 %v544
        %v627 = vpop.f32.mrf.mxu0
        %v628 = vadd.f32 %v563, %v627
        %v629 = vpop.f32.mrf.mxu0
        %v630 = vadd.f32 %v563, %v629
        %631 = vdwg.mxu0
        %vm632 = vcmp.gt.f32.partialorder %v623, 0.0
        %vm633 = vcmp.gt.f32.partialorder %v625, 0.0
        %vm634 = vcmp.gt.f32.partialorder %v628, 0.0
        %vm635 = vcmp.gt.f32.partialorder %v630, 0.0
        %v636 = vmul.f32 %v623, 1.442695
        %v637 = vpow.pop %v636
        %v638 = vmul.f32 %v625, 1.442695
        %v639 = vpow.pop %v638
        %v640 = vmul.f32 %v628, 1.442695
        %v641 = vpow.pop %v640
        %v642 = vmul.f32 %v630, 1.442695
        %v643 = vpow.pop %v642
        %v644 = vsub.f32 %v637, 1.0
        %v645 = vsub.f32 %v639, 1.0
        %v646 = vsub.f32 %v641, 1.0
        %v647 = vsub.f32 %v643, 1.0
        %v648 = vmul.f32 %v644, 1.6732632
        %v649 = vmul.f32 %v645, 1.6732632
        %v650 = vmul.f32 %v646, 1.6732632
        %v651 = vmul.f32 %v647, 1.6732632
        %v652 = vsel %vm632, %v623, %v648
        %v653 = vsel %vm633, %v625, %v649
        %v654 = vsel %vm634, %v628, %v650
        %v655 = vsel %vm635, %v630, %v651
        %v656 = vmul.f32 %v652, 1.050701
        %v657 = vmul.f32 %v653, 1.050701
        %v658 = vmul.f32 %v654, 1.050701
        %v659 = vmul.f32 %v655, 1.050701
        %v660 = vpack.c.bf16 %v657, %v656
        %v661 = vpack.c.bf16 %v659, %v658
        %v662 = vld [vmem:[%s5] sm:$0xf]
        %v663 = vld [vmem:[%s5 + $0x4] sm:$0xf]
        %v664 = vld [vmem:[%s5 + $0x8] sm:$0xf]
        %v665 = vld [vmem:[%s5 + $0xc] sm:$0xf]
        %v666 = vld [vmem:[%s5 + $0x10] sm:$0xf]
        %v667 = vld [vmem:[%s5 + $0x14] sm:$0xf]
        %v668 = vld [vmem:[%s5 + $0x18] sm:$0xf]
        %v669 = vld [vmem:[%s5 + $0x1c] sm:$0xf]
        %v670 = vld [vmem:[%s6] sm:$0x1]
        %v672 = vperm.slane %v670, 0
        %v682 = vunpack.c.l.b16 %v662
        %v683 = vunpack.c.l.b16 %v663
        %v684 = vunpack.c.l.b16 %v664
        %v685 = vunpack.c.l.b16 %v665
        %v686 = vunpack.c.l.b16 %v666
        %v687 = vunpack.c.l.b16 %v667
        %v688 = vunpack.c.l.b16 %v668
        %v689 = vunpack.c.l.b16 %v669
        %v690 = vpack.c.b16 %v683, %v682
        %v691 = vpack.c.b16 %v685, %v684
        %v692 = vpack.c.b16 %v687, %v686
        %v693 = vpack.c.b16 %v689, %v688
        %vm698 = vcmask 523264
        %v700 = vsel %vm698, %v660, 0
        %v703 = vsel %vm698, %v661, 0
        %705 = vmatpush.bf16.msra.mxu0 0
        %706 = vmatpush.bf16.msra.mxu0 0
        %707 = vmatpush.bf16.msra.mxu0 0
        %708 = vmatpush.bf16.msra.mxu0 0
        %709 = vmatpush.bf16.msra.mxu0 %v693
        %710 = vmatpush.bf16.msra.mxu0 %v692
        %711 = vmatpush.bf16.msra.mxu0 %v691
        %712 = vmatpush.bf16.msra.mxu0 %v690
        %713 = vmatmul.bf16.gmra.mxu0 %v700
        %v714 = vpop.f32.mrf.mxu0
        %v715 = vadd.f32 %v672, %v714
        %v716 = vpop.f32.mrf.mxu0
        %v717 = vadd.f32 %v672, %v716
        %718 = vmatmul.bf16.gmra.mxu0 %v703
        %v719 = vpop.f32.mrf.mxu0
        %v720 = vadd.f32 %v672, %v719
        %v721 = vpop.f32.mrf.mxu0
        %v722 = vadd.f32 %v672, %v721
        %723 = vdwg.mxu0
        %vm724 = vcmp.gt.f32.partialorder %v715, 0.0
        %vm725 = vcmp.gt.f32.partialorder %v717, 0.0
        %vm726 = vcmp.gt.f32.partialorder %v720, 0.0
        %vm727 = vcmp.gt.f32.partialorder %v722, 0.0
        %v728 = vmul.f32 %v715, 1.442695
        %v729 = vpow.pop %v728
        %v730 = vmul.f32 %v717, 1.442695
        %v731 = vpow.pop %v730
        %v732 = vmul.f32 %v720, 1.442695
        %v733 = vpow.pop %v732
        %v734 = vmul.f32 %v722, 1.442695
        %v735 = vpow.pop %v734
        %v736 = vsub.f32 %v729, 1.0
        %v737 = vsub.f32 %v731, 1.0
        %v738 = vsub.f32 %v733, 1.0
        %v739 = vsub.f32 %v735, 1.0
        %v740 = vmul.f32 %v736, 1.6732632
        %v741 = vmul.f32 %v737, 1.6732632
        %v742 = vmul.f32 %v738, 1.6732632
        %v743 = vmul.f32 %v739, 1.6732632
        %v744 = vsel %vm724, %v715, %v740
        %v745 = vsel %vm725, %v717, %v741
        %v746 = vsel %vm726, %v720, %v742
        %v747 = vsel %vm727, %v722, %v743
        %v748 = vmul.f32 %v744, 1.050701
        %v749 = vmul.f32 %v745, 1.050701
        %v750 = vmul.f32 %v746, 1.050701
        %v751 = vmul.f32 %v747, 1.050701
        %v752 = vpack.c.bf16 %v749, %v748
        %v753 = vpack.c.bf16 %v751, %v750
        %v754 = vld [vmem:[%s7] sm:$0xf]
        %v755 = vld [vmem:[%s7 + $0x4] sm:$0xf]
        %v756 = vld [vmem:[%s7 + $0x8] sm:$0xf]
        %v757 = vld [vmem:[%s7 + $0xc] sm:$0xf]
        %v758 = vld [vmem:[%s7 + $0x10] sm:$0xf]
        %v759 = vld [vmem:[%s7 + $0x14] sm:$0xf]
        %v760 = vld [vmem:[%s7 + $0x18] sm:$0xf]
        %v761 = vld [vmem:[%s7 + $0x1c] sm:$0xf]
        %v762 = vld [vmem:[%s8] sm:$0x1]
        %v764 = vperm.slane %v762, 0
        %v774 = vunpack.c.l.b16 %v754
        %v775 = vunpack.c.l.b16 %v755
        %v776 = vunpack.c.l.b16 %v756
        %v777 = vunpack.c.l.b16 %v757
        %v778 = vunpack.c.l.b16 %v758
        %v779 = vunpack.c.l.b16 %v759
        %v780 = vunpack.c.l.b16 %v760
        %v781 = vunpack.c.l.b16 %v761
        %v782 = vpack.c.b16 %v775, %v774
        %v783 = vpack.c.b16 %v777, %v776
        %v784 = vpack.c.b16 %v779, %v778
        %v785 = vpack.c.b16 %v781, %v780
        %v791 = vsel %vm698, %v752, 0
        %v794 = vsel %vm698, %v753, 0
        %796 = vmatpush.bf16.msra.mxu0 0
        %797 = vmatpush.bf16.msra.mxu0 0
        %798 = vmatpush.bf16.msra.mxu0 0
        %799 = vmatpush.bf16.msra.mxu0 0
        %800 = vmatpush.bf16.msra.mxu0 %v785
        %801 = vmatpush.bf16.msra.mxu0 %v784
        %802 = vmatpush.bf16.msra.mxu0 %v783
        %803 = vmatpush.bf16.msra.mxu0 %v782
        %804 = vmatmul.bf16.gmra.mxu0 %v791
        %v805 = vpop.f32.mrf.mxu0
        %v806 = vadd.f32 %v764, %v805
        %v807 = vpop.f32.mrf.mxu0
        %v808 = vadd.f32 %v764, %v807
        %809 = vmatmul.bf16.gmra.mxu0 %v794
        %v810 = vpop.f32.mrf.mxu0
        %v811 = vadd.f32 %v764, %v810
        %v812 = vpop.f32.mrf.mxu0
        %v813 = vadd.f32 %v764, %v812
        %814 = vdwg.mxu0
        %vm815 = vcmp.gt.f32.partialorder %v806, 0.0
        %vm816 = vcmp.gt.f32.partialorder %v808, 0.0
        %vm817 = vcmp.gt.f32.partialorder %v811, 0.0
        %vm818 = vcmp.gt.f32.partialorder %v813, 0.0
        %v819 = vmul.f32 %v806, 1.442695
        %v820 = vpow.pop %v819
        %v821 = vmul.f32 %v808, 1.442695
        %v822 = vpow.pop %v821
        %v823 = vmul.f32 %v811, 1.442695
        %v824 = vpow.pop %v823
        %v825 = vmul.f32 %v813, 1.442695
        %v826 = vpow.pop %v825
        %v827 = vsub.f32 %v820, 1.0
        %v828 = vsub.f32 %v822, 1.0
        %v829 = vsub.f32 %v824, 1.0
        %v830 = vsub.f32 %v826, 1.0
        %v831 = vmul.f32 %v827, 1.6732632
        %v832 = vmul.f32 %v828, 1.6732632
        %v833 = vmul.f32 %v829, 1.6732632
        %v834 = vmul.f32 %v830, 1.6732632
        %v835 = vsel %vm815, %v806, %v831
        %v836 = vsel %vm816, %v808, %v832
        %v837 = vsel %vm817, %v811, %v833
        %v838 = vsel %vm818, %v813, %v834
        %v839 = vmul.f32 %v835, 1.050701
        %v840 = vmul.f32 %v836, 1.050701
        %v841 = vmul.f32 %v837, 1.050701
        %v842 = vmul.f32 %v838, 1.050701
        %v843 = vpack.c.bf16 %v840, %v839
        %v844 = vpack.c.bf16 %v842, %v841
        %v845 = vld [vmem:[%s9] sm:$0xf]
        %v846 = vld [vmem:[%s9 + $0x4] sm:$0xf]
        %v847 = vld [vmem:[%s9 + $0x8] sm:$0xf]
        %v848 = vld [vmem:[%s9 + $0xc] sm:$0xf]
        %v849 = vld [vmem:[%s10] sm:$0x1]
        %v851 = vperm.slane %v849, 0
        %v857 = vunpack.c.l.b16 %v845
        %v858 = vunpack.c.l.b16 %v846
        %v859 = vunpack.c.l.b16 %v847
        %v860 = vunpack.c.l.b16 %v848
        %v861 = vpack.c.b16 %v858, %v857
        %v862 = vpack.c.b16 %v860, %v859
        %v866 = vsel %vm489, %v843, 0
        %v869 = vsel %vm489, %v844, 0
        %871 = vmatpush.bf16.msra.mxu0 0
        %872 = vmatpush.bf16.msra.mxu0 0
        %873 = vmatpush.bf16.msra.mxu0 0
        %874 = vmatpush.bf16.msra.mxu0 0
        %875 = vmatpush.bf16.msra.mxu0 0
        %876 = vmatpush.bf16.msra.mxu0 0
        %877 = vmatpush.bf16.msra.mxu0 %v862
        %878 = vmatpush.bf16.msra.mxu0 %v861
        %879 = vmatmul.bf16.gmra.mxu0 %v866
        %v880 = vpop.f32.mrf.mxu0
        %v881 = vadd.f32 %v851, %v880
        %v882 = vpop.f32.mrf.mxu0
        %v883 = vadd.f32 %v851, %v882
        %884 = vmatmul.bf16.gmra.mxu0 %v869
        %v885 = vpop.f32.mrf.mxu0
        %v886 = vadd.f32 %v851, %v885
        %v887 = vpop.f32.mrf.mxu0
        %v888 = vadd.f32 %v851, %v887
        %889 = vdwg.mxu0
        %vm890 = vcmp.gt.f32.partialorder %v881, 0.0
        %vm891 = vcmp.gt.f32.partialorder %v883, 0.0
        %vm892 = vcmp.gt.f32.partialorder %v886, 0.0
        %vm893 = vcmp.gt.f32.partialorder %v888, 0.0
        %v894 = vmul.f32 %v881, 1.442695
        %v895 = vpow.pop %v894
        %v896 = vmul.f32 %v883, 1.442695
        %v897 = vpow.pop %v896
        %v898 = vmul.f32 %v886, 1.442695
        %v899 = vpow.pop %v898
        %v900 = vmul.f32 %v888, 1.442695
        %v901 = vpow.pop %v900
        %v902 = vsub.f32 %v895, 1.0
        %v903 = vsub.f32 %v897, 1.0
        %v904 = vsub.f32 %v899, 1.0
        %v905 = vsub.f32 %v901, 1.0
        %v906 = vmul.f32 %v902, 1.6732632
        %v907 = vmul.f32 %v903, 1.6732632
        %v908 = vmul.f32 %v904, 1.6732632
        %v909 = vmul.f32 %v905, 1.6732632
        %v910 = vsel %vm890, %v881, %v906
        %v911 = vsel %vm891, %v883, %v907
        %v912 = vsel %vm892, %v886, %v908
        %v913 = vsel %vm893, %v888, %v909
        %v914 = vmul.f32 %v910, 1.050701
        %v915 = vmul.f32 %v911, 1.050701
        %v916 = vmul.f32 %v912, 1.050701
        %v917 = vmul.f32 %v913, 1.050701
        %v918 = vpack.c.bf16 %v915, %v914
        %v919 = vpack.c.bf16 %v917, %v916
        %v920 = vld [vmem:[%s11] sm:$0xf]
        %v921 = vld [vmem:[%s11 + $0x4] sm:$0xf]
        %v922 = vld [vmem:[%s11 + $0x8] sm:$0xf]
        %v923 = vld [vmem:[%s11 + $0xc] sm:$0xf]
        %v924 = vld [vmem:[%s12] sm:$0x1]
        %v926 = vperm.slane %v924, 0
        %v932 = vunpack.c.l.b16 %v920
        %v933 = vunpack.c.l.b16 %v921
        %v934 = vunpack.c.l.b16 %v922
        %v935 = vunpack.c.l.b16 %v923
        %v936 = vpack.c.b16 %v933, %v932
        %v937 = vpack.c.b16 %v935, %v934
        %v941 = vsel %vm489, %v918, 0
        %v944 = vsel %vm489, %v919, 0
        %946 = vmatpush.bf16.msra.mxu0 0
        %947 = vmatpush.bf16.msra.mxu0 0
        %948 = vmatpush.bf16.msra.mxu0 0
        %949 = vmatpush.bf16.msra.mxu0 0
        %950 = vmatpush.bf16.msra.mxu0 0
        %951 = vmatpush.bf16.msra.mxu0 0
        %952 = vmatpush.bf16.msra.mxu0 %v937
        %953 = vmatpush.bf16.msra.mxu0 %v936
        %954 = vmatmul.bf16.gmra.mxu0 %v941
        %v955 = vpop.f32.mrf.mxu0
        %v956 = vadd.f32 %v926, %v955
        %v957 = vpop.f32.mrf.mxu0
        %v958 = vadd.f32 %v926, %v957
        %959 = vmatmul.bf16.gmra.mxu0 %v944
        %v960 = vpop.f32.mrf.mxu0
        %v961 = vadd.f32 %v926, %v960
        %v962 = vpop.f32.mrf.mxu0
        %v963 = vadd.f32 %v926, %v962
        %964 = vdwg.mxu0
        %v965 = vsub.f32 0.0, %v956
        %v966 = vsub.f32 0.0, %v958
        %v967 = vsub.f32 0.0, %v961
        %v968 = vsub.f32 0.0, %v963
        %v969 = vmul.f32 %v965, 1.442695
        %v970 = vpow.pop %v969
        %v971 = vmul.f32 %v966, 1.442695
        %v972 = vpow.pop %v971
        %v973 = vmul.f32 %v967, 1.442695
        %v974 = vpow.pop %v973
        %v975 = vmul.f32 %v968, 1.442695
        %v976 = vpow.pop %v975
        %v977 = vadd.f32 %v970, 1.0
        %v978 = vadd.f32 %v972, 1.0
        %v979 = vadd.f32 %v974, 1.0
        %v980 = vadd.f32 %v976, 1.0
        %v981 = vrcp.pop %v977
        %v982 = vrcp.pop %v978
        %v983 = vrcp.pop %v979
        %v984 = vrcp.pop %v980
        %vm985 = vcmask 64512
        %986 = vst.msk [vmem:[%s442] sm:$0xff] %vm985, %v981
        %987 = vst.msk [vmem:[%s442 + $0x8] sm:$0xff] %vm985, %v982
        %988 = vst.msk [vmem:[%s442 + $0x10] sm:$0xff] %vm985, %v983
        %989 = vst.msk [vmem:[%s442 + $0x18] sm:$0xff] %vm985, %v984
        %s990 = sand.u32 %s310, 1
        %s991 = sand.u32 %s310, 1
        %s992 = smul.addr %s991, 32
        %s993 = scalar_lea.vmem [#allocation2], %s992
        // Predicated region
        $region73: #{tpu_custom_call.1} parent=71 // pred_check
          %p994 = pneg %p320
        $region74: #{tpu_custom_call.1} parent=71 // pred_check_branch
          %996 = sbr.rel (%p994) target = $region76
        $region75: #{tpu_custom_call.1} parent=71 // pred_region
          %s997 = smul.u32 4, %s24
          %s998 = ssub.s32 5, %s997
          %p999 = scmp.lt.s32.totalorder %s998, 4
          %s1000 = scalar_select %p999, %s998, 4
          %s1001 = smul.u32 8, %s1000
          %p1002 = scmp.ne.s32.totalorder 0, %s1001
          %s1003 = smul.addr %s997, 8
          %s1004 = scalar_lea.vmem %s13, %s1003
          // Predicated region
          $region77: #{tpu_custom_call.1} parent=75 // pred_check
            %p1005 = pneg %p1002
          $region78: #{tpu_custom_call.1} parent=75 // pred_check_branch
            %1007 = sbr.rel (%p1005) target = $region80
          $region79: #{tpu_custom_call.1} parent=75 // pred_region
            // Predicated region
            $region81: #{tpu_custom_call.1} parent=79 // pred_check
              _
            $region82: #{tpu_custom_call.1} parent=79 // pred_check_branch
              %1009 = sbr.rel (0) target = $region84
            $region83: #{tpu_custom_call.1} parent=79 // pred_region
              // Predicated region
              $region103: #{tpu_custom_call.1} parent=83 // pred_check
                _
              $region104: #{tpu_custom_call.1} parent=83 // pred_check_branch
                %1065 = sbr.rel (0) target = $region106
              $region105: #{tpu_custom_call.1} parent=83 // pred_region
                %s1066 = sshrl.u32 %s1000, 2
                // While loop
                $region107: #{tpu_custom_call.1} parent=105 // loop_pre_header
                  _
                $region108: #{tpu_custom_call.1} parent=105 // loop_header
                  %s1068 = sphi 0, %s1070
                  %p1069 = scmp.ge.s32.totalorder %s1068, %s1066
                  %s1073 = sphi 0, %s1086
                  %s1074 = sphi %s993, %s1089
                  %s1075 = sphi %s1004, %s1090
                $region109: #{tpu_custom_call.1} parent=105 // loop_header_branch
                  %1072 = sbr.rel (%p1069) target = $region113
                $region110: #{tpu_custom_call.1} parent=105 // loop_body
                  %v1076 = vld [vmem:[%s1074] sm:$0xff]
                  %1077 = vst [vmem:[%s1075] sm:$0xff] %v1076
                  %v1078 = vld [vmem:[%s1074 + $0x8] sm:$0xff]
                  %1079 = vst [vmem:[%s1075 + $0x8] sm:$0xff] %v1078
                  %v1080 = vld [vmem:[%s1074 + $0x10] sm:$0xff]
                  %1081 = vst [vmem:[%s1075 + $0x10] sm:$0xff] %v1080
                  %v1082 = vld [vmem:[%s1074 + $0x18] sm:$0xff]
                  %1083 = vst [vmem:[%s1075 + $0x18] sm:$0xff] %v1082
                  %s1084 = sadd.s32 1, %s1073
                  %p1085 = scmp.ge.s32.totalorder %s1084, %s1066
                  %s1086 = scalar_select %p1085, 0, %s1084
                  %s1087 = smul.u32 %s1086, 32
                  %s1088 = smul.u32 %s1086, 32
                  %s1089 = scalar_lea.vmem %s993, %s1087 [#allocation2]
                  %s1090 = scalar_lea.vmem %s1004, %s1088
                $region111: #{tpu_custom_call.1} parent=105 // loop_footer
                  %s1070 = sadd.s32 %s1068, 1
                $region112: #{tpu_custom_call.1} parent=105 // loop_footer_branch
                  %1067 = sbr.rel target = $region108
                $region113: #{tpu_custom_call.1} parent=105 // loop_exit
                  _
                %s1091 = sshrl.u32 %s1000, 2
                %s1092 = sand.u32 %s1000, 3
                %s1093 = smul.u32 %s1091, 4
                %s1094 = smul.u32 8, %s1093
                %s1095 = scalar_lea.vmem %s993, %s1094 [#allocation2]
                %s1096 = smul.u32 8, %s1093
                %s1097 = scalar_lea.vmem %s1004, %s1096
                // While loop
                $region114: #{tpu_custom_call.1} parent=105 // loop_pre_header
                  _
                $region115: #{tpu_custom_call.1} parent=105 // loop_header
                  %s1099 = sphi 0, %s1101
                  %p1100 = scmp.ge.s32.totalorder %s1099, %s1092
                  %s1104 = sphi 0, %s1111
                  %s1105 = sphi %s1095, %s1114
                  %s1106 = sphi %s1097, %s1115
                $region116: #{tpu_custom_call.1} parent=105 // loop_header_branch
                  %1103 = sbr.rel (%p1100) target = $region120
                $region117: #{tpu_custom_call.1} parent=105 // loop_body
                  %v1107 = vld [vmem:[%s1105] sm:$0xff]
                  %1108 = vst [vmem:[%s1106] sm:$0xff] %v1107
                  %s1109 = sadd.s32 1, %s1104
                  %p1110 = scmp.ge.s32.totalorder %s1109, %s1092
                  %s1111 = scalar_select %p1110, 0, %s1109
                  %s1112 = smul.u32 %s1111, 8
                  %s1113 = smul.u32 %s1111, 8
                  %s1114 = scalar_lea.vmem %s1095, %s1112 [#allocation2]
                  %s1115 = scalar_lea.vmem %s1097, %s1113
                $region118: #{tpu_custom_call.1} parent=105 // loop_footer
                  %s1101 = sadd.s32 %s1099, 1
                $region119: #{tpu_custom_call.1} parent=105 // loop_footer_branch
                  %1098 = sbr.rel target = $region115
                $region120: #{tpu_custom_call.1} parent=105 // loop_exit
                  _
              $region106: #{tpu_custom_call.1} parent=83 // pred_fallthru
                _
              // Predicated region
              $region121: #{tpu_custom_call.1} parent=83 // pred_check
                _
              $region122: #{tpu_custom_call.1} parent=83 // pred_check_branch
                %1117 = sbr.rel target = $region124
              $region123: #{tpu_custom_call.1} parent=83 // pred_region
                _
              $region124: #{tpu_custom_call.1} parent=83 // pred_fallthru
                _
            $region84: #{tpu_custom_call.1} parent=79 // pred_fallthru
              _
            // Predicated region
            $region85: #{tpu_custom_call.1} parent=79 // pred_check
              _
            $region86: #{tpu_custom_call.1} parent=79 // pred_check_branch
              %1011 = sbr.rel target = $region88
            $region87: #{tpu_custom_call.1} parent=79 // pred_region
              %s1013 = ssub.s32 256, 1
              %s1014 = sshrl.u32 %s1000, 2
              // While loop
              $region89: #{tpu_custom_call.1} parent=87 // loop_pre_header
                _
              $region90: #{tpu_custom_call.1} parent=87 // loop_header
                %s1016 = sphi 0, %s1018
                %p1017 = scmp.ge.s32.totalorder %s1016, %s1014
                %s1021 = sphi 0, %s1034
                %s1022 = sphi %s993, %s1037
                %s1023 = sphi %s1004, %s1038
              $region91: #{tpu_custom_call.1} parent=87 // loop_header_branch
                %1020 = sbr.rel (%p1017) target = $region95
              $region92: #{tpu_custom_call.1} parent=87 // loop_body
                %v1024 = vld [vmem:[%s1022] sm:%s1013]
                %1025 = vst [vmem:[%s1023] sm:%s1013] %v1024
                %v1026 = vld [vmem:[%s1022 + $0x8] sm:%s1013]
                %1027 = vst [vmem:[%s1023 + $0x8] sm:%s1013] %v1026
                %v1028 = vld [vmem:[%s1022 + $0x10] sm:%s1013]
                %1029 = vst [vmem:[%s1023 + $0x10] sm:%s1013] %v1028
                %v1030 = vld [vmem:[%s1022 + $0x18] sm:%s1013]
                %1031 = vst [vmem:[%s1023 + $0x18] sm:%s1013] %v1030
                %s1032 = sadd.s32 1, %s1021
                %p1033 = scmp.ge.s32.totalorder %s1032, %s1014
                %s1034 = scalar_select %p1033, 0, %s1032
                %s1035 = smul.u32 %s1034, 32
                %s1036 = smul.u32 %s1034, 32
                %s1037 = scalar_lea.vmem %s993, %s1035 [#allocation2]
                %s1038 = scalar_lea.vmem %s1004, %s1036
              $region93: #{tpu_custom_call.1} parent=87 // loop_footer
                %s1018 = sadd.s32 %s1016, 1
              $region94: #{tpu_custom_call.1} parent=87 // loop_footer_branch
                %1015 = sbr.rel target = $region90
              $region95: #{tpu_custom_call.1} parent=87 // loop_exit
                _
              %s1039 = sshrl.u32 %s1000, 2
              %s1040 = sand.u32 %s1000, 3
              %s1041 = smul.u32 %s1039, 4
              %s1042 = smul.u32 8, %s1041
              %s1043 = scalar_lea.vmem %s993, %s1042 [#allocation2]
              %s1044 = smul.u32 8, %s1041
              %s1045 = scalar_lea.vmem %s1004, %s1044
              // While loop
              $region96: #{tpu_custom_call.1} parent=87 // loop_pre_header
                _
              $region97: #{tpu_custom_call.1} parent=87 // loop_header
                %s1047 = sphi 0, %s1049
                %p1048 = scmp.ge.s32.totalorder %s1047, %s1040
                %s1052 = sphi 0, %s1059
                %s1053 = sphi %s1043, %s1062
                %s1054 = sphi %s1045, %s1063
              $region98: #{tpu_custom_call.1} parent=87 // loop_header_branch
                %1051 = sbr.rel (%p1048) target = $region102
              $region99: #{tpu_custom_call.1} parent=87 // loop_body
                %v1055 = vld [vmem:[%s1053] sm:%s1013]
                %1056 = vst [vmem:[%s1054] sm:%s1013] %v1055
                %s1057 = sadd.s32 1, %s1052
                %p1058 = scmp.ge.s32.totalorder %s1057, %s1040
                %s1059 = scalar_select %p1058, 0, %s1057
                %s1060 = smul.u32 %s1059, 8
                %s1061 = smul.u32 %s1059, 8
                %s1062 = scalar_lea.vmem %s1043, %s1060 [#allocation2]
                %s1063 = scalar_lea.vmem %s1045, %s1061
              $region100: #{tpu_custom_call.1} parent=87 // loop_footer
                %s1049 = sadd.s32 %s1047, 1
              $region101: #{tpu_custom_call.1} parent=87 // loop_footer_branch
                %1046 = sbr.rel target = $region97
              $region102: #{tpu_custom_call.1} parent=87 // loop_exit
                _
            $region88: #{tpu_custom_call.1} parent=79 // pred_fallthru
              _
          $region80: #{tpu_custom_call.1} parent=75 // pred_fallthru
            _
          %1118 = vnop
        $region76: #{tpu_custom_call.1} parent=71 // pred_fallthru
          _
      $region72: #{tpu_custom_call.1} parent=5 // pred_fallthru
        _
      %p1119 = scmp.le.s32.totalorder 2, %s19
      // Predicated region
      $region125: #{tpu_custom_call.1} parent=5 // pred_check
        %p1120 = pneg %p1119
      $region126: #{tpu_custom_call.1} parent=5 // pred_check_branch
        %1122 = sbr.rel (%p1120) target = $region128
      $region127: #{tpu_custom_call.1} parent=5 // pred_region
        %s1123 = ssub.s32 %s19, 2
        // Predicated region
        $region129: #{tpu_custom_call.1} parent=127 // pred_check
          %p1124 = pneg %p326
        $region130: #{tpu_custom_call.1} parent=127 // pred_check_branch
          %1126 = sbr.rel (%p1124) target = $region132
        $region131: #{tpu_custom_call.1} parent=127 // pred_region
          %s1127 = sand.u32 %s311, 1
          %s1128 = sand.u32 %s311, 1
          %s1129 = smul.addr %s1128, 32
          %s1130 = scalar_lea.vmem [#allocation2], %s1129
        $region132: #{tpu_custom_call.1} parent=127 // pred_fallthru
          _
      $region128: #{tpu_custom_call.1} parent=5 // pred_fallthru
        _
    $region6: #{tpu_custom_call.1} parent=1 // loop_footer
      %s23 = sadd.s32 1, %s19
    $region7: #{tpu_custom_call.1} parent=1 // loop_footer_branch
      %18 = sbr.rel target = $region3
    $region8: #{tpu_custom_call.1} parent=1 // loop_exit
      _

</llo_original>
